<compile_context>
chip_gen: v7x
topology: tpu7x:2x2x1
jax: 0.10.0
libtpu: 0.0.40
codegen_flags: <defaults>
</compile_context>

<pallas_src>
import functools

import jax
import jax.numpy as jnp
from jax import lax
from jax.experimental import pallas as pl
from jax.experimental.pallas import tpu as pltpu

_GOLDEN = 0x9E3779B9  # odd constant used to fold the seed in


def _round_up(a, b):
    return -(-a // b) * b


def _mix32(x):
    """'lowbias32' integer hash (bijective, strong avalanche) - pure VPU ops."""
    x = x ^ (x >> 16)
    x = x * jnp.uint32(0x21F0AAAD)
    x = x ^ (x >> 15)
    x = x * jnp.uint32(0x735A2D97)
    x = x ^ (x >> 15)
    return x


def _bits_to_unit_float(bits):
    """Top 23 bits of a uint32 draw -> float32 in [0, 1). No bitcasts needed."""
    return (bits >> 9).astype(jnp.int32).astype(jnp.float32) * jnp.float32(
        1.0 / (1 << 23)
    )


def _gen_noise_kernel(seed_ref, o_ref, *, pair_cols):
    """seed_ref: (1,) int32 in SMEM.  o_ref: (TR, TC) tile in VMEM."""
    i = pl.program_id(0)
    j = pl.program_id(1)
    tr, tc = o_ref.shape
    half = tr // 2  # one (u1, u2) pair drives two output rows

    # Globally unique pair counter (row-major over the padded pair grid).
    row0 = (i * half).astype(jnp.uint32)
    col0 = (j * tc).astype(jnp.uint32)
    rows = row0 + lax.broadcasted_iota(jnp.int32, (half, tc), 0).astype(jnp.uint32)
    cols = col0 + lax.broadcasted_iota(jnp.int32, (half, tc), 1).astype(jnp.uint32)
    pair_cnt = rows * jnp.uint32(pair_cols) + cols

    seed = seed_ref[0].astype(jnp.uint32) * jnp.uint32(_GOLDEN)

    # Two decorrelated 32-bit streams per pair (counters 2k and 2k+1).
    c2 = pair_cnt * jnp.uint32(2)
    bits1 = _mix32(_mix32(c2 + seed) ^ seed)
    bits2 = _mix32(_mix32(c2 + jnp.uint32(1) + seed) ^ seed)

    u1 = 1.0 - _bits_to_unit_float(bits1)  # (0, 1]  -> log is finite
    u2 = _bits_to_unit_float(bits2)        # [0, 1)

    # Dual-output Box-Muller: both normals of every pair are used.
    r = jnp.sqrt(-2.0 * jnp.log(u1))
    theta = jnp.float32(2.0 * jnp.pi) * u2
    o_ref[:half, :] = (r * jnp.cos(theta)).astype(o_ref.dtype)
    o_ref[half:, :] = (r * jnp.sin(theta)).astype(o_ref.dtype)


def gen_noise(x, dim2, seed=0):
    """Pallas equivalent of GenNoise(dim2).forward(x).

    x: (N, C, H, W) array (values unused; only shape/dtype matter).
    Returns: (N, dim2, H, W) array of ~N(0, 1) noise, same dtype as x.
    """
    N, _, H, W = x.shape
    R = N * dim2   # sublane-ish axis of the flat slab
    C = H * W      # lane axis of the flat slab

    # Lane-dense tiling: last dim a multiple of 128, rows a multiple of 16
    # (so each half-tile stays sublane aligned).  Cap the tile at ~1 MiB f32
    # so double-buffered output + temporaries fit comfortably in scoped VMEM
    # on every generation (v5e 16 MiB default, v7x 64 MiB physical).
    TR = min(_round_up(R, 16), 256)
    TC = min(_round_up(C, 128), 2048)
    while TR * TC * 4 > (1 << 20) and TR > 16:
        TR //= 2
    R_pad = _round_up(R, TR)
    C_pad = _round_up(C, TC)
    grid = (R_pad // TR, C_pad // TC)

    seed_arr = jnp.asarray([seed], dtype=jnp.int32)
    kernel = functools.partial(_gen_noise_kernel, pair_cols=C_pad)

    noise_flat = pl.pallas_call(
        kernel,
        out_shape=jax.ShapeDtypeStruct((R_pad, C_pad), x.dtype),
        grid=grid,
        in_specs=[pl.BlockSpec(memory_space=pltpu.MemorySpace.SMEM)],
        out_specs=pl.BlockSpec((TR, TC), lambda i, j: (i, j)),
        compiler_params=pltpu.CompilerParams(
            dimension_semantics=("parallel", "parallel")
        ),
    )(seed_arr)

    # Trim padding and restore NCHW.
    return noise_flat[:R, :C].reshape(N, dim2, H, W)


if __name__ == "__main__":
    key = jax.random.PRNGKey(0)
    # Small NCHW input consistent with a DIP-style conv net: batch=2,
    # channels=4, spatial=16x16; GenNoise replaces the channel dim with dim2=8.
    x = jax.random.normal(key, (2, 4, 16, 16), dtype=jnp.float32)
    dim2 = 8

    out = gen_noise(x, dim2, seed=0)
    out = jax.block_until_ready(out)

    # Shape/dtype match the PyTorch module; noise is finite and ~N(0, 1).
    assert out.shape == (2, dim2, 16, 16), out.shape
    assert out.dtype == x.dtype, out.dtype
    assert bool(jnp.all(jnp.isfinite(out)))
    mean = float(jnp.mean(out))
    std = float(jnp.std(out))
    assert abs(mean) < 0.2, mean
    assert 0.8 < std < 1.2, std

    print("KERNEL_OK")
</pallas_src>

<mosaic_0001>
module attributes {stable_mosaic.version = 11 : i64} {
  func.func @_gen_noise_kernel(%arg0: i32, %arg1: i32, %arg2: memref<1xi32, #tpu.memory_space<smem>>, %arg3: memref<16x256xf32, #tpu.memory_space<vmem>>) attributes {dimension_semantics = [#tpu.dimension_semantics<parallel>, #tpu.dimension_semantics<parallel>], iteration_bounds = array<i64: 1, 1>, scalar_prefetch = 0 : i64, scratch_operands = 0 : i64, tpu.core_type = #tpu.core_type<tc>, window_params = [{transform_indices = @transform_0, window_bounds = array<i64: 1>}, {transform_indices = @transform_1, window_bounds = array<i64: 16, 256>}]} {
    %c8_i32 = arith.constant 8 : i32
    %0 = arith.muli %arg0, %c8_i32 : i32
    %c256_i32 = arith.constant 256 : i32
    %1 = arith.muli %arg1, %c256_i32 : i32
    %2 = tpu.iota {dimensions = array<i32: 0>} : vector<8x256xi32>
    %3 = vector.broadcast %0 : i32 to vector<8x256xi32>
    %4 = arith.addi %3, %2 : vector<8x256xi32>
    %5 = tpu.iota {dimensions = array<i32: 1>} : vector<8x256xi32>
    %6 = vector.broadcast %1 : i32 to vector<8x256xi32>
    %7 = arith.addi %6, %5 : vector<8x256xi32>
    %c256_i32_0 = arith.constant 256 : i32
    %8 = vector.broadcast %c256_i32_0 : i32 to vector<8x256xi32>
    %9 = arith.muli %4, %8 : vector<8x256xi32>
    %10 = arith.addi %9, %7 : vector<8x256xi32>
    %c0 = arith.constant 0 : index
    %11 = memref.load %arg2[%c0] : memref<1xi32, #tpu.memory_space<smem>>
    %c-1640531527_i32 = arith.constant -1640531527 : i32
    %12 = arith.muli %11, %c-1640531527_i32 : i32
    %c2_i32 = arith.constant 2 : i32
    %13 = vector.broadcast %c2_i32 : i32 to vector<8x256xi32>
    %14 = arith.muli %10, %13 : vector<8x256xi32>
    %15 = vector.broadcast %12 : i32 to vector<8x256xi32>
    %16 = arith.addi %14, %15 : vector<8x256xi32>
    %c16_i32 = arith.constant 16 : i32
    %17 = vector.broadcast %c16_i32 : i32 to vector<8x256xi32>
    %18 = arith.shrui %16, %17 : vector<8x256xi32>
    %19 = arith.xori %16, %18 : vector<8x256xi32>
    %c569420461_i32 = arith.constant 569420461 : i32
    %20 = vector.broadcast %c569420461_i32 : i32 to vector<8x256xi32>
    %21 = arith.muli %19, %20 : vector<8x256xi32>
    %c15_i32 = arith.constant 15 : i32
    %22 = vector.broadcast %c15_i32 : i32 to vector<8x256xi32>
    %23 = arith.shrui %21, %22 : vector<8x256xi32>
    %24 = arith.xori %21, %23 : vector<8x256xi32>
    %c1935289751_i32 = arith.constant 1935289751 : i32
    %25 = vector.broadcast %c1935289751_i32 : i32 to vector<8x256xi32>
    %26 = arith.muli %24, %25 : vector<8x256xi32>
    %c15_i32_1 = arith.constant 15 : i32
    %27 = vector.broadcast %c15_i32_1 : i32 to vector<8x256xi32>
    %28 = arith.shrui %26, %27 : vector<8x256xi32>
    %29 = arith.xori %26, %28 : vector<8x256xi32>
    %30 = vector.broadcast %12 : i32 to vector<8x256xi32>
    %31 = arith.xori %29, %30 : vector<8x256xi32>
    %c16_i32_2 = arith.constant 16 : i32
    %32 = vector.broadcast %c16_i32_2 : i32 to vector<8x256xi32>
    %33 = arith.shrui %31, %32 : vector<8x256xi32>
    %34 = arith.xori %31, %33 : vector<8x256xi32>
    %c569420461_i32_3 = arith.constant 569420461 : i32
    %35 = vector.broadcast %c569420461_i32_3 : i32 to vector<8x256xi32>
    %36 = arith.muli %34, %35 : vector<8x256xi32>
    %c15_i32_4 = arith.constant 15 : i32
    %37 = vector.broadcast %c15_i32_4 : i32 to vector<8x256xi32>
    %38 = arith.shrui %36, %37 : vector<8x256xi32>
    %39 = arith.xori %36, %38 : vector<8x256xi32>
    %c1935289751_i32_5 = arith.constant 1935289751 : i32
    %40 = vector.broadcast %c1935289751_i32_5 : i32 to vector<8x256xi32>
    %41 = arith.muli %39, %40 : vector<8x256xi32>
    %c15_i32_6 = arith.constant 15 : i32
    %42 = vector.broadcast %c15_i32_6 : i32 to vector<8x256xi32>
    %43 = arith.shrui %41, %42 : vector<8x256xi32>
    %44 = arith.xori %41, %43 : vector<8x256xi32>
    %c1_i32 = arith.constant 1 : i32
    %45 = vector.broadcast %c1_i32 : i32 to vector<8x256xi32>
    %46 = arith.addi %14, %45 : vector<8x256xi32>
    %47 = vector.broadcast %12 : i32 to vector<8x256xi32>
    %48 = arith.addi %46, %47 : vector<8x256xi32>
    %c16_i32_7 = arith.constant 16 : i32
    %49 = vector.broadcast %c16_i32_7 : i32 to vector<8x256xi32>
    %50 = arith.shrui %48, %49 : vector<8x256xi32>
    %51 = arith.xori %48, %50 : vector<8x256xi32>
    %c569420461_i32_8 = arith.constant 569420461 : i32
    %52 = vector.broadcast %c569420461_i32_8 : i32 to vector<8x256xi32>
    %53 = arith.muli %51, %52 : vector<8x256xi32>
    %c15_i32_9 = arith.constant 15 : i32
    %54 = vector.broadcast %c15_i32_9 : i32 to vector<8x256xi32>
    %55 = arith.shrui %53, %54 : vector<8x256xi32>
    %56 = arith.xori %53, %55 : vector<8x256xi32>
    %c1935289751_i32_10 = arith.constant 1935289751 : i32
    %57 = vector.broadcast %c1935289751_i32_10 : i32 to vector<8x256xi32>
    %58 = arith.muli %56, %57 : vector<8x256xi32>
    %c15_i32_11 = arith.constant 15 : i32
    %59 = vector.broadcast %c15_i32_11 : i32 to vector<8x256xi32>
    %60 = arith.shrui %58, %59 : vector<8x256xi32>
    %61 = arith.xori %58, %60 : vector<8x256xi32>
    %62 = vector.broadcast %12 : i32 to vector<8x256xi32>
    %63 = arith.xori %61, %62 : vector<8x256xi32>
    %c16_i32_12 = arith.constant 16 : i32
    %64 = vector.broadcast %c16_i32_12 : i32 to vector<8x256xi32>
    %65 = arith.shrui %63, %64 : vector<8x256xi32>
    %66 = arith.xori %63, %65 : vector<8x256xi32>
    %c569420461_i32_13 = arith.constant 569420461 : i32
    %67 = vector.broadcast %c569420461_i32_13 : i32 to vector<8x256xi32>
    %68 = arith.muli %66, %67 : vector<8x256xi32>
    %c15_i32_14 = arith.constant 15 : i32
    %69 = vector.broadcast %c15_i32_14 : i32 to vector<8x256xi32>
    %70 = arith.shrui %68, %69 : vector<8x256xi32>
    %71 = arith.xori %68, %70 : vector<8x256xi32>
    %c1935289751_i32_15 = arith.constant 1935289751 : i32
    %72 = vector.broadcast %c1935289751_i32_15 : i32 to vector<8x256xi32>
    %73 = arith.muli %71, %72 : vector<8x256xi32>
    %c15_i32_16 = arith.constant 15 : i32
    %74 = vector.broadcast %c15_i32_16 : i32 to vector<8x256xi32>
    %75 = arith.shrui %73, %74 : vector<8x256xi32>
    %76 = arith.xori %73, %75 : vector<8x256xi32>
    %c9_i32 = arith.constant 9 : i32
    %77 = vector.broadcast %c9_i32 : i32 to vector<8x256xi32>
    %78 = arith.shrui %44, %77 : vector<8x256xi32>
    %79 = arith.sitofp %78 : vector<8x256xi32> to vector<8x256xf32>
    %cst = arith.constant 1.1920929E-7 : f32
    %80 = vector.broadcast %cst : f32 to vector<8x256xf32>
    %81 = arith.mulf %79, %80 : vector<8x256xf32>
    %cst_17 = arith.constant 1.000000e+00 : f32
    %82 = vector.broadcast %cst_17 : f32 to vector<8x256xf32>
    %83 = arith.subf %82, %81 : vector<8x256xf32>
    %c9_i32_18 = arith.constant 9 : i32
    %84 = vector.broadcast %c9_i32_18 : i32 to vector<8x256xi32>
    %85 = arith.shrui %76, %84 : vector<8x256xi32>
    %86 = arith.sitofp %85 : vector<8x256xi32> to vector<8x256xf32>
    %cst_19 = arith.constant 1.1920929E-7 : f32
    %87 = vector.broadcast %cst_19 : f32 to vector<8x256xf32>
    %88 = arith.mulf %86, %87 : vector<8x256xf32>
    %89 = math.log %83 : vector<8x256xf32>
    %cst_20 = arith.constant -2.000000e+00 : f32
    %90 = vector.broadcast %cst_20 : f32 to vector<8x256xf32>
    %91 = arith.mulf %90, %89 : vector<8x256xf32>
    %92 = math.sqrt %91 : vector<8x256xf32>
    %cst_21 = arith.constant 6.28318548 : f32
    %93 = vector.broadcast %cst_21 : f32 to vector<8x256xf32>
    %94 = arith.mulf %93, %88 : vector<8x256xf32>
    %95 = math.cos %94 : vector<8x256xf32>
    %96 = arith.mulf %92, %95 : vector<8x256xf32>
    %c0_22 = arith.constant 0 : index
    %c0_23 = arith.constant 0 : index
    %97 = vector.load %arg3[%c0_22, %c0_23] : memref<16x256xf32, #tpu.memory_space<vmem>>, vector<8x256xf32>
    tpu.vector_store %arg3[%c0_22, %c0_23], %96 {strides = array<i32>} : memref<16x256xf32, #tpu.memory_space<vmem>>, vector<8x256xf32>,
    %98 = math.sin %94 : vector<8x256xf32>
    %99 = arith.mulf %92, %98 : vector<8x256xf32>
    %c8 = arith.constant 8 : index
    %c0_24 = arith.constant 0 : index
    %100 = vector.load %arg3[%c8, %c0_24] : memref<16x256xf32, #tpu.memory_space<vmem>>, vector<8x256xf32>
    tpu.vector_store %arg3[%c8, %c0_24], %99 {strides = array<i32>} : memref<16x256xf32, #tpu.memory_space<vmem>>, vector<8x256xf32>,
    return
  }
  func.func @transform_0(%arg0: i32, %arg1: i32) -> i32 {
    %c0_i32 = arith.constant 0 : i32
    %c0_i32_0 = arith.constant 0 : i32
    return %c0_i32 : i32
  }
  func.func @transform_1(%arg0: i32, %arg1: i32) -> (i32, i32) {
    %c0_i32 = arith.constant 0 : i32
    return %arg0, %arg1 : i32, i32
  }
}

</mosaic_0001>

<llo_original>
// kernel: tpu_custom_call.1
$region0: #{tpu_custom_call.1}
  #allocation0 [shape = 'u32[]', space=smem, size = 0x4, offset = 0x4, fixed_abs, tag = 'smem constant byte address 0x4 - core index']
  #allocation1 [shape = 'u32[144,128]{1,0:T(1,128)}', space=vmem, size = 0x12000, scoped, tag = 'internal scratch']
  #allocation2 [shape = 's32[1]{0:T(128)S(6)}', space=smem, size = 0x200, scoped, tag = 'scoped memory for tpu_custom_call.1']
  %s0 = inlined_call_operand.<no memory space> [shape: s32[1], index: 0, kind: input, shape index: {}]
  %s1 = inlined_call_operand.hbm [shape: f32[16,256], index: 1, kind: output, shape index: {}]
  %s2 = sld [smem:[#allocation0]]
  $region14: #{tpu_custom_call.1} parent=0
    _
  %s4 = ssub.s32 1, %s2
  %s5 = scalar_select 0, %s4, %s2
  %6 = sst [smem:[#allocation2]] %s0
  $region1: #{tpu_custom_call.1} parent=0
    #allocation3 [shape = 'u8[16384]{0}', space=vmem, size = 0x4000, scoped, tag = 'output window, operand 0, single buffered']
    #allocation4 [shape = 's32[1]{0}', space=sflag, size = 0x4, scoped, tag = 'scoped memory for tpu_custom_call.1']
    %7 = vsyncpa [#allocation4], 0
    // Predicated region
    $region2: #{tpu_custom_call.1} parent=1 // pred_check
      _
    $region3: #{tpu_custom_call.1} parent=1 // pred_check_branch
      %9 = sbr.rel (0) target = $region5
    $region4: #{tpu_custom_call.1} parent=1 // pred_region
      _
    $region5: #{tpu_custom_call.1} parent=1 // pred_fallthru
      _
    %s10 = smul.u32 0, 8
    %s11 = smul.u32 0, 256
    %v12 = vlaneseq
    %v13 = vshrl.u32 %v12, 7
    %v14 = vstv %s10
    %v15 = vadd.s32 %v14, %v13
    %v16 = vlaneseq
    %v17 = vand.u32 %v16, 127
    %v18 = vadd.s32 %v17, 128
    %v19 = vstv %s11
    %v20 = vadd.s32 %v19, %v17
    %v21 = vadd.s32 %v19, %v18
    %v22 = vmul.u32 %v15, 256
    %v23 = vadd.s32 %v22, %v20
    %v24 = vadd.s32 %v22, %v21
    %s25 = sld [smem:[#allocation2]]
    %s26 = smul.u32 %s25, 2654435769
    %v27 = vmul.u32 %v23, 2
    %v28 = vmul.u32 %v24, 2
    %v29 = vstv %s26
    %v30 = vadd.s32 %v27, %v29
    %v31 = vadd.s32 %v28, %v29
    %v32 = vshrl.u32 %v30, 16
    %v33 = vshrl.u32 %v31, 16
    %v34 = vxor.u32 %v30, %v32
    %v35 = vxor.u32 %v31, %v33
    %v36 = vmul.u32 %v34, 569420461
    %v37 = vmul.u32 %v35, 569420461
    %v38 = vshrl.u32 %v36, 15
    %v39 = vshrl.u32 %v37, 15
    %v40 = vxor.u32 %v36, %v38
    %v41 = vxor.u32 %v37, %v39
    %v42 = vmul.u32 %v40, 1935289751
    %v43 = vmul.u32 %v41, 1935289751
    %v44 = vshrl.u32 %v42, 15
    %v45 = vshrl.u32 %v43, 15
    %v46 = vxor.u32 %v42, %v44
    %v47 = vxor.u32 %v43, %v45
    %v48 = vxor.u32 %v46, %v29
    %v49 = vxor.u32 %v47, %v29
    %v50 = vshrl.u32 %v48, 16
    %v51 = vshrl.u32 %v49, 16
    %v52 = vxor.u32 %v48, %v50
    %v53 = vxor.u32 %v49, %v51
    %v54 = vmul.u32 %v52, 569420461
    %v55 = vmul.u32 %v53, 569420461
    %v56 = vshrl.u32 %v54, 15
    %v57 = vshrl.u32 %v55, 15
    %v58 = vxor.u32 %v54, %v56
    %v59 = vxor.u32 %v55, %v57
    %v60 = vmul.u32 %v58, 1935289751
    %v61 = vmul.u32 %v59, 1935289751
    %v62 = vshrl.u32 %v60, 15
    %v63 = vshrl.u32 %v61, 15
    %v64 = vxor.u32 %v60, %v62
    %v65 = vxor.u32 %v61, %v63
    %v66 = vadd.s32 %v27, 1
    %v67 = vadd.s32 %v28, 1
    %v68 = vadd.s32 %v66, %v29
    %v69 = vadd.s32 %v67, %v29
    %v70 = vshrl.u32 %v68, 16
    %v71 = vshrl.u32 %v69, 16
    %v72 = vxor.u32 %v68, %v70
    %v73 = vxor.u32 %v69, %v71
    %v74 = vmul.u32 %v72, 569420461
    %v75 = vmul.u32 %v73, 569420461
    %v76 = vshrl.u32 %v74, 15
    %v77 = vshrl.u32 %v75, 15
    %v78 = vxor.u32 %v74, %v76
    %v79 = vxor.u32 %v75, %v77
    %v80 = vmul.u32 %v78, 1935289751
    %v81 = vmul.u32 %v79, 1935289751
    %v82 = vshrl.u32 %v80, 15
    %v83 = vshrl.u32 %v81, 15
    %v84 = vxor.u32 %v80, %v82
    %v85 = vxor.u32 %v81, %v83
    %v86 = vxor.u32 %v84, %v29
    %v87 = vxor.u32 %v85, %v29
    %v88 = vshrl.u32 %v86, 16
    %v89 = vshrl.u32 %v87, 16
    %v90 = vxor.u32 %v86, %v88
    %v91 = vxor.u32 %v87, %v89
    %v92 = vmul.u32 %v90, 569420461
    %v93 = vmul.u32 %v91, 569420461
    %v94 = vshrl.u32 %v92, 15
    %v95 = vshrl.u32 %v93, 15
    %v96 = vxor.u32 %v92, %v94
    %v97 = vxor.u32 %v93, %v95
    %v98 = vmul.u32 %v96, 1935289751
    %v99 = vmul.u32 %v97, 1935289751
    %v100 = vshrl.u32 %v98, 15
    %v101 = vshrl.u32 %v99, 15
    %v102 = vxor.u32 %v98, %v100
    %v103 = vxor.u32 %v99, %v101
    %v104 = vshrl.u32 %v64, 9
    %v105 = vshrl.u32 %v65, 9
    %v106 = vcvt.s32.f32 %v104
    %v107 = vcvt.s32.f32 %v105
    %v108 = vmul.f32 %v106, 1.1920929e-07
    %v109 = vmul.f32 %v107, 1.1920929e-07
    %v110 = vsub.f32 1.0, %v108
    %v111 = vsub.f32 1.0, %v109
    %v112 = vshrl.u32 %v102, 9
    %v113 = vshrl.u32 %v103, 9
    %v114 = vcvt.s32.f32 %v112
    %v115 = vcvt.s32.f32 %v113
    %v116 = vmul.f32 %v114, 1.1920929e-07
    %v117 = vmul.f32 %v115, 1.1920929e-07
    %v118 = vlog2.pop %v110
    %v119 = vmul.f32 %v118, 0.6931472
    %v120 = vlog2.pop %v111
    %v121 = vmul.f32 %v120, 0.6931472
    %v122 = vmul.f32 %v119, -2.0
    %v123 = vmul.f32 %v121, -2.0
    %v124 = vrsqrt.pop %v122
    %v125 = vmul.f32 %v122, %v124
    %vm126 = vcmp.eq.f32.partialorder %v122, inf
    %v127 = vsel %vm126, %v122, %v125
    %vm128 = vcmp.eq.f32.partialorder %v122, 0.0
    %v129 = vand.u32 %v122, 2147483648
    %v130 = vsel %vm128, %v129, %v127
    %v131 = vrsqrt.pop %v123
    %v132 = vmul.f32 %v123, %v131
    %vm133 = vcmp.eq.f32.partialorder %v123, inf
    %v134 = vsel %vm133, %v123, %v132
    %vm135 = vcmp.eq.f32.partialorder %v123, 0.0
    %v136 = vand.u32 %v123, 2147483648
    %v137 = vsel %vm135, %v136, %v134
    %v138 = vmul.f32 %v116, 6.2831855
    %v139 = vmul.f32 %v117, 6.2831855
    %v140 = vand.u32 2147483647, %v138
    %vm141 = vcmp.le.f32.partialorder %v140, 0.7853982
    %vm142 = vcmp.lt.s32.totalorder %v138, 0
    %v143 = vand.u32 %v138, 2139095040
    %v144 = vshrl.u32 %v143, 23
    %v145 = vsub.s32 %v144, 127
    %v146 = vand.u32 2147483647, %v138
    %v147 = vand.u32 %v146, 8388607
    %v148 = vor.u32 %v147, 8388608
    %v149 = vsub.s32 0, %v148
    %v150 = vadd.s32 %v145, 1
    %vm151 = vcmp.gt.s32.totalorder %v150, 0
    %v152 = vsel %vm151, %v150, 0
    %v153 = vshrl.u32 %v152, 5
    %v154 = vand.u32 %v152, 31
    %v155 = vsub.s32 32, %v154
    %v156 = vshrl.u32 683565275, %v155
    %v157 = vshll.u32 683565275, %v154
    %v158 = vshrl.u32 2475754826, %v155
    %v159 = vor.u32 %v157, %v158
    %v160 = vshll.u32 2475754826, %v154
    %v161 = vshrl.u32 2131351028, %v155
    %v162 = vor.u32 %v160, %v161
    %v163 = vshll.u32 2131351028, %v154
    %v164 = vshrl.u32 2102212464, %v155
    %v165 = vor.u32 %v163, %v164
    %v166 = vshll.u32 2102212464, %v154
    %v167 = vshrl.u32 920167782, %v155
    %v168 = vor.u32 %v166, %v167
    %v169 = vshll.u32 920167782, %v154
    %v170 = vshrl.u32 1326507024, %v155
    %v171 = vor.u32 %v169, %v170
    %vm172 = vcmp.lt.s32.totalorder %v153, 1
    %vm173 = vcmp.lt.s32.totalorder %v153, 2
    %vm174 = vcmp.lt.s32.totalorder %v153, 3
    %vm175 = vcmp.lt.s32.totalorder %v153, 4
    %v176 = vsel %vm172, %v156, %v159
    %v177 = vsel %vm175, %v165, 2102212464
    %v178 = vsel %vm174, %v162, %v177
    %v179 = vsel %vm173, %v176, %v178
    %v180 = vsel %vm172, %v159, %v162
    %v181 = vsel %vm175, %v168, 920167782
    %v182 = vsel %vm174, %v165, %v181
    %v183 = vsel %vm173, %v180, %v182
    %v184 = vsel %vm172, %v162, %v165
    %v185 = vsel %vm175, %v171, 1326507024
    %v186 = vsel %vm174, %v168, %v185
    %v187 = vsel %vm173, %v184, %v186
    %v188 = vshll.u32 %v148, 8
    %v189 = vmul.u32.u64.compose %v188, %v187
    %v190 = vextract.low.u32 %v189
    %v191 = vextract.high.u32 %v189
    %v192 = vmul.u32.u64.compose %v188, %v183
    %v193 = vextract.low.u32 %v192
    %v194 = vextract.high.u32 %v192
    %v195 = vmul.u32 %v188, %v179
    %v196 = vadd.s32 %v191, %v193
    %vm197 = vc.u32 %v191, %v193
    %v198 = vadd.s32 %v194, 1
    %v199 = vsel %vm197, %v198, %v194
    %v200 = vadd.s32 %v195, %v199
    %v201 = vadd.s32 %v200, 536870912
    %v202 = vshrl.u32 %v201, 30
    %v203 = vshll.u32 %v202, 30
    %v204 = vsub.s32 %v200, %v203
    %vm205 = vcmp.lt.s32.totalorder %v204, 0
    %v206 = vsub.s32 0, %v204
    %v207 = vsel %vm205, %v206, %v204
    %v208 = vclz %v207
    %v209 = vsub.s32 %v208, 2
    %vm210 = vcmp.gt.s32.totalorder 0, %v209
    %v211 = vsel %vm210, 0, %v209
    %v212 = vsub.s32 32, %v211
    %v213 = vshll.u32 %v204, %v211
    %v214 = vshrl.u32 %v196, %v212
    %v215 = vor.u32 %v213, %v214
    %v216 = vsub.s32 4294967266, %v211
    %v217 = vadd.s32 %v216, 127
    %v218 = vshll.u32 %v217, 23
    %v219 = vor.u32 4788187, %v218
    %v220 = vand.u32 2147483647, %v219
    %v222 = vcvt.s32.f32 %v215
    %v223 = vmul.f32 %v222, %v220
    %v224 = vxor.u32 %v223, 2147483648
    %v225 = vsel %vm142, %v224, %v223
    %v226 = vsub.s32 4, %v202
    %v227 = vsel %vm142, %v226, %v202
    %v228 = vsel %vm141, %v138, %v225
    %v229 = vsel %vm141, 0, %v227
    %v230 = vcosq.f32.pop %v228
    %v231 = vsinq.f32.pop %v228
    %vm232 = vweird.f32 %v138
    %v233 = vand.u32 %v229, 3
    %vm234 = vcmp.lt.s32.totalorder %v233, 2
    %vm235 = vcmp.eq.s32.totalorder %v233, 0
    %v236 = vxor.u32 %v231, 2147483648
    %v237 = vsel %vm235, %v230, %v236
    %vm238 = vcmp.eq.s32.totalorder %v233, 2
    %v239 = vxor.u32 %v230, 2147483648
    %v240 = vsel %vm238, %v239, %v231
    %v241 = vsel %vm234, %v237, %v240
    %v242 = vsel %vm232, nan, %v241
    %v243 = vand.u32 2147483647, %v139
    %vm244 = vcmp.le.f32.partialorder %v243, 0.7853982
    %vm245 = vcmp.lt.s32.totalorder %v139, 0
    %v246 = vand.u32 %v139, 2139095040
    %v247 = vshrl.u32 %v246, 23
    %v248 = vsub.s32 %v247, 127
    %v249 = vand.u32 2147483647, %v139
    %v250 = vand.u32 %v249, 8388607
    %v251 = vor.u32 %v250, 8388608
    %v252 = vsub.s32 0, %v251
    %v253 = vadd.s32 %v248, 1
    %vm254 = vcmp.gt.s32.totalorder %v253, 0
    %v255 = vsel %vm254, %v253, 0
    %v256 = vshrl.u32 %v255, 5
    %v257 = vand.u32 %v255, 31
    %v258 = vsub.s32 32, %v257
    %v259 = vshrl.u32 683565275, %v258
    %v260 = vshll.u32 683565275, %v257
    %v261 = vshrl.u32 2475754826, %v258
    %v262 = vor.u32 %v260, %v261
    %v263 = vshll.u32 2475754826, %v257
    %v264 = vshrl.u32 2131351028, %v258
    %v265 = vor.u32 %v263, %v264
    %v266 = vshll.u32 2131351028, %v257
    %v267 = vshrl.u32 2102212464, %v258
    %v268 = vor.u32 %v266, %v267
    %v269 = vshll.u32 2102212464, %v257
    %v270 = vshrl.u32 920167782, %v258
    %v271 = vor.u32 %v269, %v270
    %v272 = vshll.u32 920167782, %v257
    %v273 = vshrl.u32 1326507024, %v258
    %v274 = vor.u32 %v272, %v273
    %vm275 = vcmp.lt.s32.totalorder %v256, 1
    %vm276 = vcmp.lt.s32.totalorder %v256, 2
    %vm277 = vcmp.lt.s32.totalorder %v256, 3
    %vm278 = vcmp.lt.s32.totalorder %v256, 4
    %v279 = vsel %vm275, %v259, %v262
    %v280 = vsel %vm278, %v268, 2102212464
    %v281 = vsel %vm277, %v265, %v280
    %v282 = vsel %vm276, %v279, %v281
    %v283 = vsel %vm275, %v262, %v265
    %v284 = vsel %vm278, %v271, 920167782
    %v285 = vsel %vm277, %v268, %v284
    %v286 = vsel %vm276, %v283, %v285
    %v287 = vsel %vm275, %v265, %v268
    %v288 = vsel %vm278, %v274, 1326507024
    %v289 = vsel %vm277, %v271, %v288
    %v290 = vsel %vm276, %v287, %v289
    %v291 = vshll.u32 %v251, 8
    %v292 = vmul.u32.u64.compose %v291, %v290
    %v293 = vextract.low.u32 %v292
    %v294 = vextract.high.u32 %v292
    %v295 = vmul.u32.u64.compose %v291, %v286
    %v296 = vextract.low.u32 %v295
    %v297 = vextract.high.u32 %v295
    %v298 = vmul.u32 %v291, %v282
    %v299 = vadd.s32 %v294, %v296
    %vm300 = vc.u32 %v294, %v296
    %v301 = vadd.s32 %v297, 1
    %v302 = vsel %vm300, %v301, %v297
    %v303 = vadd.s32 %v298, %v302
    %v304 = vadd.s32 %v303, 536870912
    %v305 = vshrl.u32 %v304, 30
    %v306 = vshll.u32 %v305, 30
    %v307 = vsub.s32 %v303, %v306
    %vm308 = vcmp.lt.s32.totalorder %v307, 0
    %v309 = vsub.s32 0, %v307
    %v310 = vsel %vm308, %v309, %v307
    %v311 = vclz %v310
    %v312 = vsub.s32 %v311, 2
    %vm313 = vcmp.gt.s32.totalorder 0, %v312
    %v314 = vsel %vm313, 0, %v312
    %v315 = vsub.s32 32, %v314
    %v316 = vshll.u32 %v307, %v314
    %v317 = vshrl.u32 %v299, %v315
    %v318 = vor.u32 %v316, %v317
    %v319 = vsub.s32 4294967266, %v314
    %v320 = vadd.s32 %v319, 127
    %v321 = vshll.u32 %v320, 23
    %v322 = vor.u32 4788187, %v321
    %v323 = vand.u32 2147483647, %v322
    %v325 = vcvt.s32.f32 %v318
    %v326 = vmul.f32 %v325, %v323
    %v327 = vxor.u32 %v326, 2147483648
    %v328 = vsel %vm245, %v327, %v326
    %v329 = vsub.s32 4, %v305
    %v330 = vsel %vm245, %v329, %v305
    %v331 = vsel %vm244, %v139, %v328
    %v332 = vsel %vm244, 0, %v330
    %v333 = vcosq.f32.pop %v331
    %v334 = vsinq.f32.pop %v331
    %vm335 = vweird.f32 %v139
    %v336 = vand.u32 %v332, 3
    %vm337 = vcmp.lt.s32.totalorder %v336, 2
    %vm338 = vcmp.eq.s32.totalorder %v336, 0
    %v339 = vxor.u32 %v334, 2147483648
    %v340 = vsel %vm338, %v333, %v339
    %vm341 = vcmp.eq.s32.totalorder %v336, 2
    %v342 = vxor.u32 %v333, 2147483648
    %v343 = vsel %vm341, %v342, %v334
    %v344 = vsel %vm337, %v340, %v343
    %v345 = vsel %vm335, nan, %v344
    %v346 = vmul.f32 %v130, %v242
    %v347 = vmul.f32 %v137, %v345
    %348 = vst [vmem:[#allocation3] sm:$0xff] %v346
    %349 = vst [vmem:[#allocation3 + $0x8] sm:$0xff] %v347
    %v350 = vand.u32 2147483647, %v138
    %vm351 = vcmp.le.f32.partialorder %v350, 0.7853982
    %vm352 = vcmp.lt.s32.totalorder %v138, 0
    %v353 = vand.u32 %v138, 2139095040
    %v354 = vshrl.u32 %v353, 23
    %v355 = vsub.s32 %v354, 127
    %v356 = vand.u32 2147483647, %v138
    %v357 = vand.u32 %v356, 8388607
    %v358 = vor.u32 %v357, 8388608
    %v359 = vsub.s32 0, %v358
    %v360 = vadd.s32 %v355, 1
    %vm361 = vcmp.gt.s32.totalorder %v360, 0
    %v362 = vsel %vm361, %v360, 0
    %v363 = vshrl.u32 %v362, 5
    %v364 = vand.u32 %v362, 31
    %v365 = vsub.s32 32, %v364
    %v366 = vshrl.u32 683565275, %v365
    %v367 = vshll.u32 683565275, %v364
    %v368 = vshrl.u32 2475754826, %v365
    %v369 = vor.u32 %v367, %v368
    %v370 = vshll.u32 2475754826, %v364
    %v371 = vshrl.u32 2131351028, %v365
    %v372 = vor.u32 %v370, %v371
    %v373 = vshll.u32 2131351028, %v364
    %v374 = vshrl.u32 2102212464, %v365
    %v375 = vor.u32 %v373, %v374
    %v376 = vshll.u32 2102212464, %v364
    %v377 = vshrl.u32 920167782, %v365
    %v378 = vor.u32 %v376, %v377
    %v379 = vshll.u32 920167782, %v364
    %v380 = vshrl.u32 1326507024, %v365
    %v381 = vor.u32 %v379, %v380
    %vm382 = vcmp.lt.s32.totalorder %v363, 1
    %vm383 = vcmp.lt.s32.totalorder %v363, 2
    %vm384 = vcmp.lt.s32.totalorder %v363, 3
    %vm385 = vcmp.lt.s32.totalorder %v363, 4
    %v386 = vsel %vm382, %v366, %v369
    %v387 = vsel %vm385, %v375, 2102212464
    %v388 = vsel %vm384, %v372, %v387
    %v389 = vsel %vm383, %v386, %v388
    %v390 = vsel %vm382, %v369, %v372
    %v391 = vsel %vm385, %v378, 920167782
    %v392 = vsel %vm384, %v375, %v391
    %v393 = vsel %vm383, %v390, %v392
    %v394 = vsel %vm382, %v372, %v375
    %v395 = vsel %vm385, %v381, 1326507024
    %v396 = vsel %vm384, %v378, %v395
    %v397 = vsel %vm383, %v394, %v396
    %v398 = vshll.u32 %v358, 8
    %v399 = vmul.u32.u64.compose %v398, %v397
    %v400 = vextract.low.u32 %v399
    %v401 = vextract.high.u32 %v399
    %v402 = vmul.u32.u64.compose %v398, %v393
    %v403 = vextract.low.u32 %v402
    %v404 = vextract.high.u32 %v402
    %v405 = vmul.u32 %v398, %v389
    %v406 = vadd.s32 %v401, %v403
    %vm407 = vc.u32 %v401, %v403
    %v408 = vadd.s32 %v404, 1
    %v409 = vsel %vm407, %v408, %v404
    %v410 = vadd.s32 %v405, %v409
    %v411 = vadd.s32 %v410, 536870912
    %v412 = vshrl.u32 %v411, 30
    %v413 = vshll.u32 %v412, 30
    %v414 = vsub.s32 %v410, %v413
    %vm415 = vcmp.lt.s32.totalorder %v414, 0
    %v416 = vsub.s32 0, %v414
    %v417 = vsel %vm415, %v416, %v414
    %v418 = vclz %v417
    %v419 = vsub.s32 %v418, 2
    %vm420 = vcmp.gt.s32.totalorder 0, %v419
    %v421 = vsel %vm420, 0, %v419
    %v422 = vsub.s32 32, %v421
    %v423 = vshll.u32 %v414, %v421
    %v424 = vshrl.u32 %v406, %v422
    %v425 = vor.u32 %v423, %v424
    %v426 = vsub.s32 4294967266, %v421
    %v427 = vadd.s32 %v426, 127
    %v428 = vshll.u32 %v427, 23
    %v429 = vor.u32 4788187, %v428
    %v430 = vand.u32 2147483647, %v429
    %v432 = vcvt.s32.f32 %v425
    %v433 = vmul.f32 %v432, %v430
    %v434 = vxor.u32 %v433, 2147483648
    %v435 = vsel %vm352, %v434, %v433
    %v436 = vsub.s32 4, %v412
    %v437 = vsel %vm352, %v436, %v412
    %v438 = vsel %vm351, %v138, %v435
    %v439 = vsel %vm351, 0, %v437
    %v440 = vcosq.f32.pop %v438
    %v441 = vsinq.f32.pop %v438
    %vm442 = vweird.f32 %v138
    %v443 = vadd.s32 %v439, 3
    %v444 = vand.u32 %v443, 3
    %vm445 = vcmp.lt.s32.totalorder %v444, 2
    %vm446 = vcmp.eq.s32.totalorder %v444, 0
    %v447 = vxor.u32 %v441, 2147483648
    %v448 = vsel %vm446, %v440, %v447
    %vm449 = vcmp.eq.s32.totalorder %v444, 2
    %v450 = vxor.u32 %v440, 2147483648
    %v451 = vsel %vm449, %v450, %v441
    %v452 = vsel %vm445, %v448, %v451
    %v453 = vsel %vm442, nan, %v452
    %v454 = vand.u32 2147483647, %v139
    %vm455 = vcmp.le.f32.partialorder %v454, 0.7853982
    %vm456 = vcmp.lt.s32.totalorder %v139, 0
    %v457 = vand.u32 %v139, 2139095040
    %v458 = vshrl.u32 %v457, 23
    %v459 = vsub.s32 %v458, 127
    %v460 = vand.u32 2147483647, %v139
    %v461 = vand.u32 %v460, 8388607
    %v462 = vor.u32 %v461, 8388608
    %v463 = vsub.s32 0, %v462
    %v464 = vadd.s32 %v459, 1
    %vm465 = vcmp.gt.s32.totalorder %v464, 0
    %v466 = vsel %vm465, %v464, 0
    %v467 = vshrl.u32 %v466, 5
    %v468 = vand.u32 %v466, 31
    %v469 = vsub.s32 32, %v468
    %v470 = vshrl.u32 683565275, %v469
    %v471 = vshll.u32 683565275, %v468
    %v472 = vshrl.u32 2475754826, %v469
    %v473 = vor.u32 %v471, %v472
    %v474 = vshll.u32 2475754826, %v468
    %v475 = vshrl.u32 2131351028, %v469
    %v476 = vor.u32 %v474, %v475
    %v477 = vshll.u32 2131351028, %v468
    %v478 = vshrl.u32 2102212464, %v469
    %v479 = vor.u32 %v477, %v478
    %v480 = vshll.u32 2102212464, %v468
    %v481 = vshrl.u32 920167782, %v469
    %v482 = vor.u32 %v480, %v481
    %v483 = vshll.u32 920167782, %v468
    %v484 = vshrl.u32 1326507024, %v469
    %v485 = vor.u32 %v483, %v484
    %vm486 = vcmp.lt.s32.totalorder %v467, 1
    %vm487 = vcmp.lt.s32.totalorder %v467, 2
    %vm488 = vcmp.lt.s32.totalorder %v467, 3
    %vm489 = vcmp.lt.s32.totalorder %v467, 4
    %v490 = vsel %vm486, %v470, %v473
    %v491 = vsel %vm489, %v479, 2102212464
    %v492 = vsel %vm488, %v476, %v491
    %v493 = vsel %vm487, %v490, %v492
    %v494 = vsel %vm486, %v473, %v476
    %v495 = vsel %vm489, %v482, 920167782
    %v496 = vsel %vm488, %v479, %v495
    %v497 = vsel %vm487, %v494, %v496
    %v498 = vsel %vm486, %v476, %v479
    %v499 = vsel %vm489, %v485, 1326507024
    %v500 = vsel %vm488, %v482, %v499
    %v501 = vsel %vm487, %v498, %v500
    %v502 = vshll.u32 %v462, 8
    %v503 = vmul.u32.u64.compose %v502, %v501
    %v504 = vextract.low.u32 %v503
    %v505 = vextract.high.u32 %v503
    %v506 = vmul.u32.u64.compose %v502, %v497
    %v507 = vextract.low.u32 %v506
    %v508 = vextract.high.u32 %v506
    %v509 = vmul.u32 %v502, %v493
    %v510 = vadd.s32 %v505, %v507
    %vm511 = vc.u32 %v505, %v507
    %v512 = vadd.s32 %v508, 1
    %v513 = vsel %vm511, %v512, %v508
    %v514 = vadd.s32 %v509, %v513
    %v515 = vadd.s32 %v514, 536870912
    %v516 = vshrl.u32 %v515, 30
    %v517 = vshll.u32 %v516, 30
    %v518 = vsub.s32 %v514, %v517
    %vm519 = vcmp.lt.s32.totalorder %v518, 0
    %v520 = vsub.s32 0, %v518
    %v521 = vsel %vm519, %v520, %v518
    %v522 = vclz %v521
    %v523 = vsub.s32 %v522, 2
    %vm524 = vcmp.gt.s32.totalorder 0, %v523
    %v525 = vsel %vm524, 0, %v523
    %v526 = vsub.s32 32, %v525
    %v527 = vshll.u32 %v518, %v525
    %v528 = vshrl.u32 %v510, %v526
    %v529 = vor.u32 %v527, %v528
    %v530 = vsub.s32 4294967266, %v525
    %v531 = vadd.s32 %v530, 127
    %v532 = vshll.u32 %v531, 23
    %v533 = vor.u32 4788187, %v532
    %v534 = vand.u32 2147483647, %v533
    %v536 = vcvt.s32.f32 %v529
    %v537 = vmul.f32 %v536, %v534
    %v538 = vxor.u32 %v537, 2147483648
    %v539 = vsel %vm456, %v538, %v537
    %v540 = vsub.s32 4, %v516
    %v541 = vsel %vm456, %v540, %v516
    %v542 = vsel %vm455, %v139, %v539
    %v543 = vsel %vm455, 0, %v541
    %v544 = vcosq.f32.pop %v542
    %v545 = vsinq.f32.pop %v542
    %vm546 = vweird.f32 %v139
    %v547 = vadd.s32 %v543, 3
    %v548 = vand.u32 %v547, 3
    %vm549 = vcmp.lt.s32.totalorder %v548, 2
    %vm550 = vcmp.eq.s32.totalorder %v548, 0
    %v551 = vxor.u32 %v545, 2147483648
    %v552 = vsel %vm550, %v544, %v551
    %vm553 = vcmp.eq.s32.totalorder %v548, 2
    %v554 = vxor.u32 %v544, 2147483648
    %v555 = vsel %vm553, %v554, %v545
    %v556 = vsel %vm549, %v552, %v555
    %v557 = vsel %vm546, nan, %v556
    %v558 = vmul.f32 %v130, %v453
    %v559 = vmul.f32 %v137, %v557
    %560 = vst [vmem:[#allocation3 + $0x10] sm:$0xff] %v558
    %561 = vst [vmem:[#allocation3 + $0x18] sm:$0xff] %v559
    // Predicated region
    $region6: #{tpu_custom_call.1} parent=1 // pred_check
      _
    $region7: #{tpu_custom_call.1} parent=1 // pred_check_branch
      %563 = sbr.rel (0) target = $region9
    $region8: #{tpu_custom_call.1} parent=1 // pred_region
      %s565 = ssub.s32 512, 512
      %566 = vsyncadd [#allocation4], %s565
      %s567 = sshll.u32 [#allocation3], 4
      %s568 = int_to_ptr.vmem [resolvable:$true] %s567
      %573 = dma.vmem_to_hbm [thread:$0]  %s568, 512, %s1, [#allocation4], 256, 256, 16
    $region9: #{tpu_custom_call.1} parent=1 // pred_fallthru
      _
    // Predicated region
    $region10: #{tpu_custom_call.1} parent=1 // pred_check
      _
    $region11: #{tpu_custom_call.1} parent=1 // pred_check_branch
      %575 = sbr.rel (0) target = $region13
    $region12: #{tpu_custom_call.1} parent=1 // pred_region
      %576 = dma.done [#allocation4], 512
    $region13: #{tpu_custom_call.1} parent=1 // pred_fallthru
      _
    %577 = vsyncpa [#allocation4], 1

</llo_original>
